<compile_context>
chip_gen: v7x
topology: tpu7x:2x2x1
jax: 0.10.0
libtpu: 0.0.40
codegen_flags: <defaults>
</compile_context>

<pallas_src>
import math
import functools

import jax
import jax.numpy as jnp
from jax.experimental import pallas as pl
from jax.experimental.pallas import tpu as pltpu

LOG_STD_MAX = 2.0
LOG_STD_MIN = -20.0
_HALF_LOG_2PI = 0.5 * math.log(2.0 * math.pi)


def _gaussian_policy_kernel(
    x_ref,          # (TB, S)        f32
    noise_t_ref,    # (A, TB)        f32  (batch on lanes)
    w1_ref, b1_ref,  # (S, H1)  bf16, (1, H1) f32
    w2_ref, b2_ref,  # (H1, H2) bf16, (1, H2) f32
    w3_ref, b3_ref,  # (H2, 2A) bf16, (1, 2A) f32   (fused means/log_std head)
    out_ref,        # (2A + 1, TB)   f32  rows = [actions | tanh(means) | entropy]
    *,
    action_dim: int,
):
    A = action_dim

    # MLP: Linear -> ReLU -> Linear -> ReLU -> Linear(2A)   (batch on sublanes)
    x = x_ref[...].astype(jnp.bfloat16)
    h1 = jnp.dot(x, w1_ref[...], preferred_element_type=jnp.float32) + b1_ref[...]
    h1 = jnp.maximum(h1, 0.0).astype(jnp.bfloat16)
    h2 = jnp.dot(h1, w2_ref[...], preferred_element_type=jnp.float32) + b2_ref[...]
    h2 = jnp.maximum(h2, 0.0).astype(jnp.bfloat16)
    head = jnp.dot(h2, w3_ref[...], preferred_element_type=jnp.float32) + b3_ref[...]

    # One small transpose of the narrow head so the batch dim sits on lanes for
    # the elementwise tail (lane-dense instead of 2A/128 lane occupancy).
    head_t = head.T                                       # (2A, TB)
    means_t = head_t[:A, :]
    log_stds_t = jnp.clip(head_t[A:2 * A, :], LOG_STD_MIN, LOG_STD_MAX)
    stds_t = jnp.exp(log_stds_t)

    # rsample: xs = means + stds * eps
    eps_t = noise_t_ref[...]                              # (A, TB)
    xs_t = means_t + stds_t * eps_t
    actions_t = jnp.tanh(xs_t)

    # Normal(means, stds).log_prob(xs) - log(1 - tanh(xs)^2 + 1e-6)
    # note: (xs - means) / stds == eps
    log_probs_t = (-0.5 * eps_t * eps_t) - log_stds_t - _HALF_LOG_2PI
    log_probs_t = log_probs_t - jnp.log(1.0 - actions_t * actions_t + 1e-6)
    entropies_t = -jnp.sum(log_probs_t, axis=0, keepdims=True)   # (1, TB)

    tanh_means_t = jnp.tanh(means_t)

    # Direct sub-range stores — no concatenate, no pad lanes.
    out_ref[:A, :] = actions_t
    out_ref[A:2 * A, :] = tanh_means_t
    out_ref[2 * A:2 * A + 1, :] = entropies_t


def _pick_batch_tile(B, max_tb):
    """Large tiles (few grid steps); multiples of 128 for lane-dense output
    stores / MXU alignment; >= 2 blocks when B is large enough so both v7x
    TensorCores get work (megacore shards the 'parallel' batch axis)."""
    if B <= 256:
        return B                               # single grid step
    tb = min(-(-B // 2), max_tb)               # ceil(B / 2): at least two blocks
    return max(128, (tb // 128) * 128)


def gaussian_policy_forward(states, params, noise, *, max_block_b=1024):
    """Returns (actions, entropies, tanh(means)) like GaussianPolicy.forward."""
    B, S = states.shape
    A = noise.shape[1]
    H1 = params["w1"].shape[1]
    H2 = params["w2"].shape[1]
    assert params["w3"].shape[1] == 2 * A

    TB = _pick_batch_tile(B, max_block_b)
    n_blocks = pl.cdiv(B, TB)     # ragged last block handled by Pallas block padding

    noise_t = noise.T             # (A, B): batch on lanes inside the kernel

    kernel = functools.partial(_gaussian_policy_kernel, action_dim=A)

    out_t = pl.pallas_call(
        kernel,
        out_shape=jax.ShapeDtypeStruct((2 * A + 1, B), jnp.float32),
        grid=(n_blocks,),
        in_specs=[
            pl.BlockSpec((TB, S), lambda i: (i, 0)),         # states (batch-tiled)
            pl.BlockSpec((A, TB), lambda i: (0, i)),         # noise^T (batch on lanes)
            pl.BlockSpec((S, H1), lambda i: (0, 0)),         # w1 (resident)
            pl.BlockSpec((1, H1), lambda i: (0, 0)),         # b1
            pl.BlockSpec((H1, H2), lambda i: (0, 0)),        # w2 (resident)
            pl.BlockSpec((1, H2), lambda i: (0, 0)),         # b2
            pl.BlockSpec((H2, 2 * A), lambda i: (0, 0)),     # w3 fused heads (resident)
            pl.BlockSpec((1, 2 * A), lambda i: (0, 0)),      # b3
        ],
        out_specs=pl.BlockSpec((2 * A + 1, TB), lambda i: (0, i)),
        compiler_params=pltpu.CompilerParams(
            dimension_semantics=("parallel",),
            vmem_limit_bytes=32 * 1024 * 1024,   # headroom for TB=1024 on v5e
        ),
    )(
        states, noise_t,
        params["w1"], params["b1"],
        params["w2"], params["b2"],
        params["w3"], params["b3"],
    )

    out = out_t.T                                   # (B, 2A + 1)
    actions = out[:, :A]
    tanh_means = out[:, A:2 * A]
    entropies = out[:, 2 * A:2 * A + 1]
    return actions, entropies, tanh_means


def _reference_forward(states, params, noise):
    """Pure-JAX reference using the same bf16/f32 math as the kernel."""
    A = noise.shape[1]
    x = states.astype(jnp.bfloat16)
    h1 = jnp.dot(x, params["w1"], preferred_element_type=jnp.float32) + params["b1"]
    h1 = jnp.maximum(h1, 0.0).astype(jnp.bfloat16)
    h2 = jnp.dot(h1, params["w2"], preferred_element_type=jnp.float32) + params["b2"]
    h2 = jnp.maximum(h2, 0.0).astype(jnp.bfloat16)
    head = jnp.dot(h2, params["w3"], preferred_element_type=jnp.float32) + params["b3"]
    means = head[:, :A]
    log_stds = jnp.clip(head[:, A:], LOG_STD_MIN, LOG_STD_MAX)
    stds = jnp.exp(log_stds)
    xs = means + stds * noise
    actions = jnp.tanh(xs)
    log_probs = (-0.5 * noise * noise) - log_stds - _HALF_LOG_2PI
    log_probs = log_probs - jnp.log(1.0 - actions * actions + 1e-6)
    entropies = -jnp.sum(log_probs, axis=1, keepdims=True)
    return actions, entropies, jnp.tanh(means)


def _xavier_uniform(key, fan_in, fan_out, gain=1.0):
    bound = gain * math.sqrt(6.0 / (fan_in + fan_out))
    return jax.random.uniform(
        key, (fan_in, fan_out), dtype=jnp.float32, minval=-bound, maxval=bound
    )


def init_params(key, state_dim, action_dim, hidden_units=(256, 256)):
    h1, h2 = hidden_units
    k1, k2, k3 = jax.random.split(key, 3)
    # Weights stored (in, out) so the kernel computes x @ W + b (== x @ W.T + b
    # with PyTorch's (out, in) layout). Weights are bf16 for the MXU; biases f32.
    return {
        "w1": _xavier_uniform(k1, state_dim, h1).astype(jnp.bfloat16),
        "b1": jnp.zeros((1, h1), jnp.float32),
        "w2": _xavier_uniform(k2, h1, h2).astype(jnp.bfloat16),
        "b2": jnp.zeros((1, h2), jnp.float32),
        "w3": _xavier_uniform(k3, h2, 2 * action_dim).astype(jnp.bfloat16),  # fused heads
        "b3": jnp.zeros((1, 2 * action_dim), jnp.float32),
    }


def _check_case(B, state_dim, action_dim, params, key, max_block_b=1024):
    ks, kn = jax.random.split(key)
    states = jax.random.normal(ks, (B, state_dim), dtype=jnp.float32)
    noise = jax.random.normal(kn, (B, action_dim), dtype=jnp.float32)

    actions, entropies, tanh_means = gaussian_policy_forward(
        states, params, noise, max_block_b=max_block_b
    )
    jax.block_until_ready((actions, entropies, tanh_means))

    assert actions.shape == (B, action_dim)
    assert entropies.shape == (B, 1)
    assert tanh_means.shape == (B, action_dim)
    assert bool(jnp.all(jnp.isfinite(actions)))
    assert bool(jnp.all(jnp.isfinite(entropies)))
    assert bool(jnp.all(jnp.isfinite(tanh_means)))

    ra, re, rt = _reference_forward(states, params, noise)
    assert bool(jnp.allclose(actions, ra, atol=1e-2, rtol=1e-2))
    assert bool(jnp.allclose(entropies, re, atol=2e-2, rtol=2e-2))
    assert bool(jnp.allclose(tanh_means, rt, atol=1e-2, rtol=1e-2))


if __name__ == "__main__":
    STATE_DIM = 32
    ACTION_DIM = 8

    key = jax.random.PRNGKey(0)
    k_params, k_case1, k_case2 = jax.random.split(key, 3)
    params = init_params(k_params, STATE_DIM, ACTION_DIM)

    # Case 1: small batch -> single grid step (no per-step-overhead waste).
    _check_case(64, STATE_DIM, ACTION_DIM, params, k_case1)

    # Case 2: multi-block grid with a ragged last block (300 = 2*128 + 44),
    # exercising Pallas block padding (no wrapper-side jnp.pad).
    _check_case(300, STATE_DIM, ACTION_DIM, params, k_case2)

    print("KERNEL_OK")
</pallas_src>

<mosaic_0001>
module attributes {stable_mosaic.version = 11 : i64} {
  func.func @_gaussian_policy_kernel(%arg0: i32, %arg1: memref<64x32xf32, #tpu.memory_space<vmem>>, %arg2: memref<8x64xf32, #tpu.memory_space<vmem>>, %arg3: memref<32x256xbf16, #tpu.memory_space<vmem>>, %arg4: memref<1x256xf32, #tpu.memory_space<vmem>>, %arg5: memref<256x256xbf16, #tpu.memory_space<vmem>>, %arg6: memref<1x256xf32, #tpu.memory_space<vmem>>, %arg7: memref<256x16xbf16, #tpu.memory_space<vmem>>, %arg8: memref<1x16xf32, #tpu.memory_space<vmem>>, %arg9: memref<17x64xf32, #tpu.memory_space<vmem>>) attributes {dimension_semantics = [#tpu.dimension_semantics<parallel>], iteration_bounds = array<i64: 1>, scalar_prefetch = 0 : i64, scratch_operands = 0 : i64, tpu.core_type = #tpu.core_type<tc>, window_params = [{transform_indices = @transform_0, window_bounds = array<i64: 64, 32>}, {transform_indices = @transform_1, window_bounds = array<i64: 8, 64>}, {pipeline_mode = #tpu.pipeline_mode<synchronous>, transform_indices = @transform_2, window_bounds = array<i64: 32, 256>}, {pipeline_mode = #tpu.pipeline_mode<synchronous>, transform_indices = @transform_3, window_bounds = array<i64: 1, 256>}, {pipeline_mode = #tpu.pipeline_mode<synchronous>, transform_indices = @transform_4, window_bounds = array<i64: 256, 256>}, {pipeline_mode = #tpu.pipeline_mode<synchronous>, transform_indices = @transform_5, window_bounds = array<i64: 1, 256>}, {pipeline_mode = #tpu.pipeline_mode<synchronous>, transform_indices = @transform_6, window_bounds = array<i64: 256, 16>}, {pipeline_mode = #tpu.pipeline_mode<synchronous>, transform_indices = @transform_7, window_bounds = array<i64: 1, 16>}, {transform_indices = @transform_8, window_bounds = array<i64: 17, 64>}]} {
    %c0 = arith.constant 0 : index
    %c0_0 = arith.constant 0 : index
    %0 = vector.load %arg1[%c0, %c0_0] : memref<64x32xf32, #tpu.memory_space<vmem>>, vector<64x32xf32>
    %1 = arith.truncf %0 : vector<64x32xf32> to vector<64x32xbf16>
    %c0_1 = arith.constant 0 : index
    %c0_2 = arith.constant 0 : index
    %2 = vector.load %arg3[%c0_1, %c0_2] : memref<32x256xbf16, #tpu.memory_space<vmem>>, vector<32x256xbf16>
    %cst = arith.constant dense<0.000000e+00> : vector<64x256xf32>
    %3 = tpu.matmul %1, %2, %cst {dimension_numbers = #tpu.dot_dimension_numbers<[1], [0], [0], [1], [0, 0, 1, 1], [], []>} : vector<64x32xbf16>, vector<32x256xbf16>, vector<64x256xf32> -> vector<64x256xf32>
    %c0_3 = arith.constant 0 : index
    %c0_4 = arith.constant 0 : index
    %4 = vector.load %arg4[%c0_3, %c0_4] : memref<1x256xf32, #tpu.memory_space<vmem>>, vector<1x256xf32>
    %5 = vector.broadcast %4 : vector<1x256xf32> to vector<64x256xf32>
    %6 = arith.addf %3, %5 : vector<64x256xf32>
    %cst_5 = arith.constant 0.000000e+00 : f32
    %7 = vector.broadcast %cst_5 : f32 to vector<64x256xf32>
    %8 = arith.maximumf %6, %7 : vector<64x256xf32>
    %9 = arith.truncf %8 : vector<64x256xf32> to vector<64x256xbf16>
    %c0_6 = arith.constant 0 : index
    %c0_7 = arith.constant 0 : index
    %10 = vector.load %arg5[%c0_6, %c0_7] : memref<256x256xbf16, #tpu.memory_space<vmem>>, vector<256x256xbf16>
    %cst_8 = arith.constant dense<0.000000e+00> : vector<64x256xf32>
    %11 = tpu.matmul %9, %10, %cst_8 {dimension_numbers = #tpu.dot_dimension_numbers<[1], [0], [0], [1], [0, 0, 1, 1], [], []>} : vector<64x256xbf16>, vector<256x256xbf16>, vector<64x256xf32> -> vector<64x256xf32>
    %c0_9 = arith.constant 0 : index
    %c0_10 = arith.constant 0 : index
    %12 = vector.load %arg6[%c0_9, %c0_10] : memref<1x256xf32, #tpu.memory_space<vmem>>, vector<1x256xf32>
    %13 = vector.broadcast %12 : vector<1x256xf32> to vector<64x256xf32>
    %14 = arith.addf %11, %13 : vector<64x256xf32>
    %cst_11 = arith.constant 0.000000e+00 : f32
    %15 = vector.broadcast %cst_11 : f32 to vector<64x256xf32>
    %16 = arith.maximumf %14, %15 : vector<64x256xf32>
    %17 = arith.truncf %16 : vector<64x256xf32> to vector<64x256xbf16>
    %c0_12 = arith.constant 0 : index
    %c0_13 = arith.constant 0 : index
    %18 = vector.load %arg7[%c0_12, %c0_13] : memref<256x16xbf16, #tpu.memory_space<vmem>>, vector<256x16xbf16>
    %cst_14 = arith.constant dense<0.000000e+00> : vector<64x16xf32>
    %19 = tpu.matmul %17, %18, %cst_14 {dimension_numbers = #tpu.dot_dimension_numbers<[1], [0], [0], [1], [0, 0, 1, 1], [], []>} : vector<64x256xbf16>, vector<256x16xbf16>, vector<64x16xf32> -> vector<64x16xf32>
    %c0_15 = arith.constant 0 : index
    %c0_16 = arith.constant 0 : index
    %20 = vector.load %arg8[%c0_15, %c0_16] : memref<1x16xf32, #tpu.memory_space<vmem>>, vector<1x16xf32>
    %21 = vector.broadcast %20 : vector<1x16xf32> to vector<64x16xf32>
    %22 = arith.addf %19, %21 : vector<64x16xf32>
    %23 = tpu.transpose %22, [1, 0] : vector<64x16xf32> -> vector<16x64xf32>
    %24 = vector.extract_strided_slice %23 {offsets = [0, 0], sizes = [8, 64], strides = [1, 1]} : vector<16x64xf32> to vector<8x64xf32>
    %25 = vector.extract_strided_slice %23 {offsets = [8, 0], sizes = [8, 64], strides = [1, 1]} : vector<16x64xf32> to vector<8x64xf32>
    %cst_17 = arith.constant -2.000000e+01 : f32
    %cst_18 = arith.constant 2.000000e+00 : f32
    %26 = vector.broadcast %cst_17 : f32 to vector<8x64xf32>
    %27 = arith.maximumf %26, %25 : vector<8x64xf32>
    %28 = vector.broadcast %cst_18 : f32 to vector<8x64xf32>
    %29 = arith.minimumf %28, %27 : vector<8x64xf32>
    %30 = math.exp %29 : vector<8x64xf32>
    %c0_19 = arith.constant 0 : index
    %c0_20 = arith.constant 0 : index
    %31 = vector.load %arg2[%c0_19, %c0_20] : memref<8x64xf32, #tpu.memory_space<vmem>>, vector<8x64xf32>
    %32 = arith.mulf %30, %31 : vector<8x64xf32>
    %33 = arith.addf %24, %32 : vector<8x64xf32>
    %34 = math.tanh %33 : vector<8x64xf32>
    %cst_21 = arith.constant -5.000000e-01 : f32
    %35 = vector.broadcast %cst_21 : f32 to vector<8x64xf32>
    %36 = arith.mulf %35, %31 : vector<8x64xf32>
    %37 = arith.mulf %36, %31 : vector<8x64xf32>
    %38 = arith.subf %37, %29 : vector<8x64xf32>
    %cst_22 = arith.constant 0.918938517 : f32
    %39 = vector.broadcast %cst_22 : f32 to vector<8x64xf32>
    %40 = arith.subf %38, %39 : vector<8x64xf32>
    %41 = arith.mulf %34, %34 : vector<8x64xf32>
    %cst_23 = arith.constant 1.000000e+00 : f32
    %42 = vector.broadcast %cst_23 : f32 to vector<8x64xf32>
    %43 = arith.subf %42, %41 : vector<8x64xf32>
    %cst_24 = arith.constant 9.99999997E-7 : f32
    %44 = vector.broadcast %cst_24 : f32 to vector<8x64xf32>
    %45 = arith.addf %43, %44 : vector<8x64xf32>
    %46 = math.log %45 : vector<8x64xf32>
    %47 = arith.subf %40, %46 : vector<8x64xf32>
    %cst_25 = arith.constant dense<0.000000e+00> : vector<64xf32>
    %48 = vector.multi_reduction <add>, %47, %cst_25 [0] : vector<8x64xf32> to vector<64xf32>
    %49 = vector.shape_cast %48 : vector<64xf32> to vector<1x64xf32>
    %cst_26 = arith.constant 0.000000e+00 : f32
    %50 = vector.broadcast %cst_26 : f32 to vector<1x64xf32>
    %51 = arith.subf %50, %49 : vector<1x64xf32>
    %52 = math.tanh %24 : vector<8x64xf32>
    %c0_27 = arith.constant 0 : index
    %c0_28 = arith.constant 0 : index
    %53 = vector.load %arg9[%c0_27, %c0_28] : memref<17x64xf32, #tpu.memory_space<vmem>>, vector<8x64xf32>
    tpu.vector_store %arg9[%c0_27, %c0_28], %34 {strides = array<i32>} : memref<17x64xf32, #tpu.memory_space<vmem>>, vector<8x64xf32>,
    %c8 = arith.constant 8 : index
    %c0_29 = arith.constant 0 : index
    %54 = vector.load %arg9[%c8, %c0_29] : memref<17x64xf32, #tpu.memory_space<vmem>>, vector<8x64xf32>
    tpu.vector_store %arg9[%c8, %c0_29], %52 {strides = array<i32>} : memref<17x64xf32, #tpu.memory_space<vmem>>, vector<8x64xf32>,
    %c16 = arith.constant 16 : index
    %c0_30 = arith.constant 0 : index
    %55 = vector.load %arg9[%c16, %c0_30] : memref<17x64xf32, #tpu.memory_space<vmem>>, vector<1x64xf32>
    tpu.vector_store %arg9[%c16, %c0_30], %51 {strides = array<i32>} : memref<17x64xf32, #tpu.memory_space<vmem>>, vector<1x64xf32>,
    return
  }
  func.func @transform_0(%arg0: i32) -> (i32, i32) {
    %c0_i32 = arith.constant 0 : i32
    %c0_i32_0 = arith.constant 0 : i32
    return %arg0, %c0_i32 : i32, i32
  }
  func.func @transform_1(%arg0: i32) -> (i32, i32) {
    %c0_i32 = arith.constant 0 : i32
    %c0_i32_0 = arith.constant 0 : i32
    return %c0_i32, %arg0 : i32, i32
  }
  func.func @transform_2(%arg0: i32) -> (i32, i32) {
    %c0_i32 = arith.constant 0 : i32
    %c0_i32_0 = arith.constant 0 : i32
    %c0_i32_1 = arith.constant 0 : i32
    return %c0_i32, %c0_i32_0 : i32, i32
  }
  func.func @transform_3(%arg0: i32) -> (i32, i32) {
    %c0_i32 = arith.constant 0 : i32
    %c0_i32_0 = arith.constant 0 : i32
    %c0_i32_1 = arith.constant 0 : i32
    return %c0_i32, %c0_i32_0 : i32, i32
  }
  func.func @transform_4(%arg0: i32) -> (i32, i32) {
    %c0_i32 = arith.constant 0 : i32
    %c0_i32_0 = arith.constant 0 : i32
    %c0_i32_1 = arith.constant 0 : i32
    return %c0_i32, %c0_i32_0 : i32, i32
  }
  func.func @transform_5(%arg0: i32) -> (i32, i32) {
    %c0_i32 = arith.constant 0 : i32
    %c0_i32_0 = arith.constant 0 : i32
    %c0_i32_1 = arith.constant 0 : i32
    return %c0_i32, %c0_i32_0 : i32, i32
  }
  func.func @transform_6(%arg0: i32) -> (i32, i32) {
    %c0_i32 = arith.constant 0 : i32
    %c0_i32_0 = arith.constant 0 : i32
    %c0_i32_1 = arith.constant 0 : i32
    return %c0_i32, %c0_i32_0 : i32, i32
  }
  func.func @transform_7(%arg0: i32) -> (i32, i32) {
    %c0_i32 = arith.constant 0 : i32
    %c0_i32_0 = arith.constant 0 : i32
    %c0_i32_1 = arith.constant 0 : i32
    return %c0_i32, %c0_i32_0 : i32, i32
  }
  func.func @transform_8(%arg0: i32) -> (i32, i32) {
    %c0_i32 = arith.constant 0 : i32
    %c0_i32_0 = arith.constant 0 : i32
    return %c0_i32, %arg0 : i32, i32
  }
}

</mosaic_0001>

<llo_original>
// kernel: tpu_custom_call.1
$region0: #{tpu_custom_call.1}
  #allocation0 [shape = 'u32[]', space=smem, size = 0x4, offset = 0x4, fixed_abs, tag = 'smem constant byte address 0x4 - core index']
  #allocation1 [shape = 'u32[144,128]{1,0:T(1,128)}', space=vmem, size = 0x12000, scoped, tag = 'internal scratch']
  %s0 = inlined_call_operand.vmem [shape: f32[64,32], index: 0, kind: input, shape index: {}]
  %s1 = inlined_call_operand.vmem [shape: f32[8,64], index: 1, kind: input, shape index: {}]
  %s2 = inlined_call_operand.vmem [shape: bf16[32,256], index: 2, kind: input, shape index: {}]
  %s3 = inlined_call_operand.vmem [shape: f32[1,256], index: 3, kind: input, shape index: {}]
  %s4 = inlined_call_operand.hbm [shape: bf16[256,256], index: 4, kind: input, shape index: {}]
  %s5 = inlined_call_operand.vmem [shape: f32[1,256], index: 5, kind: input, shape index: {}]
  %s6 = inlined_call_operand.vmem [shape: bf16[256,16], index: 6, kind: input, shape index: {}]
  %s7 = inlined_call_operand.vmem [shape: f32[1,16], index: 7, kind: input, shape index: {}]
  %s8 = inlined_call_operand.hbm [shape: f32[17,64], index: 8, kind: output, shape index: {}]
  %s9 = sld [smem:[#allocation0]]
  $region46: #{tpu_custom_call.1} parent=0
    _
  %s11 = ssub.s32 1, %s9
  %s12 = scalar_select 0, %s11, %s9
  $region1: #{tpu_custom_call.1} parent=0
    #allocation2 [shape = 'u8[131072]{0}', space=vmem, size = 0x20000, scoped, tag = 'input window, operand 4, single buffered']
    #allocation3 [shape = 's32[1]{0}', space=sflag, size = 0x4, scoped, tag = 'scoped memory for tpu_custom_call.1']
    #allocation4 [shape = 's32[1]{0}', space=sflag, size = 0x4, scoped, tag = 'scoped memory for tpu_custom_call.1']
    #allocation5 [shape = 'u8[12288]{0}', space=vmem, size = 0x3000, scoped, tag = 'output window, operand 0, single buffered']
    %13 = vsyncpa [#allocation3], 0
    %14 = vsyncpa [#allocation4], 0
    // Predicated region
    $region2: #{tpu_custom_call.1} parent=1 // pred_check
      _
    $region3: #{tpu_custom_call.1} parent=1 // pred_check_branch
      %16 = sbr.rel (0) target = $region5
    $region4: #{tpu_custom_call.1} parent=1 // pred_region
      _
    $region5: #{tpu_custom_call.1} parent=1 // pred_fallthru
      _
    // Predicated region
    $region6: #{tpu_custom_call.1} parent=1 // pred_check
      _
    $region7: #{tpu_custom_call.1} parent=1 // pred_check_branch
      %18 = sbr.rel (0) target = $region9
    $region8: #{tpu_custom_call.1} parent=1 // pred_region
      _
    $region9: #{tpu_custom_call.1} parent=1 // pred_fallthru
      _
    // Predicated region
    $region10: #{tpu_custom_call.1} parent=1 // pred_check
      _
    $region11: #{tpu_custom_call.1} parent=1 // pred_check_branch
      %20 = sbr.rel (0) target = $region13
    $region12: #{tpu_custom_call.1} parent=1 // pred_region
      _
    $region13: #{tpu_custom_call.1} parent=1 // pred_fallthru
      _
    // Predicated region
    $region14: #{tpu_custom_call.1} parent=1 // pred_check
      _
    $region15: #{tpu_custom_call.1} parent=1 // pred_check_branch
      %22 = sbr.rel (0) target = $region17
    $region16: #{tpu_custom_call.1} parent=1 // pred_region
      _
    $region17: #{tpu_custom_call.1} parent=1 // pred_fallthru
      _
    // Predicated region
    $region18: #{tpu_custom_call.1} parent=1 // pred_check
      _
    $region19: #{tpu_custom_call.1} parent=1 // pred_check_branch
      %24 = sbr.rel (0) target = $region21
    $region20: #{tpu_custom_call.1} parent=1 // pred_region
      %s26 = ssub.s32 4096, 4096
      %27 = vsyncadd [#allocation3], %s26
      %s28 = sshll.u32 [#allocation2], 4
      %s29 = int_to_ptr.vmem [resolvable:$true] %s28
      %34 = dma.hbm_to_vmem [thread:$0]  %s4, 4096, %s29, [#allocation3], 128, 128, 8
    $region21: #{tpu_custom_call.1} parent=1 // pred_fallthru
      _
    // Predicated region
    $region22: #{tpu_custom_call.1} parent=1 // pred_check
      _
    $region23: #{tpu_custom_call.1} parent=1 // pred_check_branch
      %36 = sbr.rel (0) target = $region25
    $region24: #{tpu_custom_call.1} parent=1 // pred_region
      _
    $region25: #{tpu_custom_call.1} parent=1 // pred_fallthru
      _
    // Predicated region
    $region26: #{tpu_custom_call.1} parent=1 // pred_check
      _
    $region27: #{tpu_custom_call.1} parent=1 // pred_check_branch
      %38 = sbr.rel (0) target = $region29
    $region28: #{tpu_custom_call.1} parent=1 // pred_region
      _
    $region29: #{tpu_custom_call.1} parent=1 // pred_fallthru
      _
    // Predicated region
    $region30: #{tpu_custom_call.1} parent=1 // pred_check
      _
    $region31: #{tpu_custom_call.1} parent=1 // pred_check_branch
      %40 = sbr.rel (0) target = $region33
    $region32: #{tpu_custom_call.1} parent=1 // pred_region
      _
    $region33: #{tpu_custom_call.1} parent=1 // pred_fallthru
      _
    // Predicated region
    $region34: #{tpu_custom_call.1} parent=1 // pred_check
      _
    $region35: #{tpu_custom_call.1} parent=1 // pred_check_branch
      %42 = sbr.rel (0) target = $region37
    $region36: #{tpu_custom_call.1} parent=1 // pred_region
      %43 = dma.done [#allocation3], 4096
    $region37: #{tpu_custom_call.1} parent=1 // pred_fallthru
      _
    %v45 = vld [vmem:[%s0] sm:$0xff]
    %v46 = vld [vmem:[%s0 + $0x8] sm:$0xff]
    %v47 = vld [vmem:[%s0 + $0x10] sm:$0xff]
    %v48 = vld [vmem:[%s0 + $0x18] sm:$0xff]
    %v49 = vld [vmem:[%s0 + $0x20] sm:$0xff]
    %v50 = vld [vmem:[%s0 + $0x28] sm:$0xff]
    %v51 = vld [vmem:[%s0 + $0x30] sm:$0xff]
    %v52 = vld [vmem:[%s0 + $0x38] sm:$0xff]
    %v53 = vpack.c.bf16 %v46, %v45
    %v54 = vpack.c.bf16 %v48, %v47
    %v55 = vpack.c.bf16 %v50, %v49
    %v56 = vpack.c.bf16 %v52, %v51
    %v57 = vld [vmem:[%s2] sm:$0xff]
    %v58 = vld [vmem:[%s2 + $0x8] sm:$0xff]
    %v59 = vld [vmem:[%s2 + $0x10] sm:$0xff]
    %v60 = vld [vmem:[%s2 + $0x18] sm:$0xff]
    %v61 = vld [vmem:[%s3] sm:$0x3]
    %v63 = vlaneseq
    %v64 = vshrl.u32 %v63, 7
    %v65 = vsub.s32 0, %v64
    %v66 = vrot.slane %v61, %v65
    %v67 = vlaneseq
    %v68 = vshrl.u32 %v67, 7
    %v69 = vsub.s32 1, %v68
    %v70 = vrot.slane %v61, %v69
    %v77 = vunpack.c.l.b16 %v57
    %v78 = vunpack.c.h.b16 %v57
    %v79 = vunpack.c.l.b16 %v58
    %v80 = vunpack.c.h.b16 %v58
    %v81 = vunpack.c.l.b16 %v59
    %v82 = vunpack.c.h.b16 %v59
    %v83 = vunpack.c.l.b16 %v60
    %v84 = vunpack.c.h.b16 %v60
    %v85 = vpack.c.b16 %v79, %v77
    %v86 = vpack.c.b16 %v80, %v78
    %v87 = vpack.c.b16 %v83, %v81
    %v88 = vpack.c.b16 %v84, %v82
    %vm93 = vcmask 261120
    %v95 = vsel %vm93, %v53, 0
    %v98 = vsel %vm93, %v54, 0
    %v101 = vsel %vm93, %v55, 0
    %v104 = vsel %vm93, %v56, 0
    %106 = vmatprep.subr.bf16.mxu0 %v86
    %107 = vmatpush1.bf16.msra.mxu0 %v85
    %108 = vmatprep.subr.bf16.mxu0 %v88
    %109 = vmatpush1.bf16.msra.mxu0 %v87
    %110 = vmatprep.subr.bf16.mxu0 0
    %111 = vmatpush1.bf16.msra.mxu0 0
    %112 = vmatprep.subr.bf16.mxu0 0
    %113 = vmatpush1.bf16.msra.mxu0 0
    %114 = vmatprep.subr.bf16.mxu0 0
    %115 = vmatpush1.bf16.msra.mxu0 0
    %116 = vmatprep.subr.bf16.mxu0 0
    %117 = vmatpush1.bf16.msra.mxu0 0
    %118 = vmatprep.subr.bf16.mxu0 0
    %119 = vmatpush1.bf16.msra.mxu0 0
    %120 = vmatprep.subr.bf16.mxu0 0
    %121 = vmatpush1.bf16.msra.mxu0 0
    %122 = vmatprep.subr.bf16.mxu0 0
    %123 = vmatpush1.bf16.msra.mxu0 0
    %124 = vmatprep.subr.bf16.mxu0 0
    %125 = vmatpush1.bf16.msra.mxu0 0
    %126 = vmatprep.subr.bf16.mxu0 0
    %127 = vmatpush1.bf16.msra.mxu0 0
    %128 = vmatprep.subr.bf16.mxu0 0
    %129 = vmatpush1.bf16.msra.mxu0 0
    %130 = vmatprep.subr.bf16.mxu0 0
    %131 = vmatpush1.bf16.msra.mxu0 0
    %132 = vmatprep.subr.bf16.mxu0 0
    %133 = vmatpush1.bf16.msra.mxu0 0
    %134 = vmatprep.subr.bf16.mxu0 0
    %135 = vmatpush1.bf16.msra.mxu0 0
    %136 = vmatprep.subr.bf16.mxu0 0
    %137 = vmatpush1.bf16.msra.mxu0 0
    %138 = vmatprep.mubr.bf16.mxu0 0
    %139 = vmatmul.mubr.bf16.gmra.mrb[0].mxu0 %v95
    %v140 = vpop.f32.mrb[0].mxu0
    %v141 = vadd.f32 %v66, %v140
    %v142 = vpop.f32.mrb[0].mxu0
    %v143 = vadd.f32 %v70, %v142
    %v144 = vpop.f32.mrb[0].mxu0
    %v145 = vadd.f32 %v66, %v144
    %v146 = vpop.f32.mrb[0].mxu0
    %v147 = vadd.f32 %v70, %v146
    %148 = vmatprep.mubr.bf16.mxu0 0
    %149 = vmatmul.mubr.bf16.gmra.mrb[0].mxu0 %v98
    %v150 = vpop.f32.mrb[0].mxu0
    %v151 = vadd.f32 %v66, %v150
    %v152 = vpop.f32.mrb[0].mxu0
    %v153 = vadd.f32 %v70, %v152
    %v154 = vpop.f32.mrb[0].mxu0
    %v155 = vadd.f32 %v66, %v154
    %v156 = vpop.f32.mrb[0].mxu0
    %v157 = vadd.f32 %v70, %v156
    %158 = vmatprep.mubr.bf16.mxu0 0
    %159 = vmatmul.mubr.bf16.gmra.mrb[0].mxu0 %v101
    %v160 = vpop.f32.mrb[0].mxu0
    %v161 = vadd.f32 %v66, %v160
    %v162 = vpop.f32.mrb[0].mxu0
    %v163 = vadd.f32 %v70, %v162
    %v164 = vpop.f32.mrb[0].mxu0
    %v165 = vadd.f32 %v66, %v164
    %v166 = vpop.f32.mrb[0].mxu0
    %v167 = vadd.f32 %v70, %v166
    %168 = vmatprep.mubr.bf16.mxu0 0
    %169 = vmatmul.mubr.bf16.gmra.mrb[0].mxu0 %v104
    %v170 = vpop.f32.mrb[0].mxu0
    %v171 = vadd.f32 %v66, %v170
    %v172 = vpop.f32.mrb[0].mxu0
    %v173 = vadd.f32 %v70, %v172
    %v174 = vpop.f32.mrb[0].mxu0
    %v175 = vadd.f32 %v66, %v174
    %v176 = vpop.f32.mrb[0].mxu0
    %v177 = vadd.f32 %v70, %v176
    %178 = vdwg.mxu0
    %v179 = vmax.f32 %v141, 0.0
    %v180 = vmax.f32 %v143, 0.0
    %v181 = vmax.f32 %v145, 0.0
    %v182 = vmax.f32 %v147, 0.0
    %v183 = vmax.f32 %v151, 0.0
    %v184 = vmax.f32 %v153, 0.0
    %v185 = vmax.f32 %v155, 0.0
    %v186 = vmax.f32 %v157, 0.0
    %v187 = vmax.f32 %v161, 0.0
    %v188 = vmax.f32 %v163, 0.0
    %v189 = vmax.f32 %v165, 0.0
    %v190 = vmax.f32 %v167, 0.0
    %v191 = vmax.f32 %v171, 0.0
    %v192 = vmax.f32 %v173, 0.0
    %v193 = vmax.f32 %v175, 0.0
    %v194 = vmax.f32 %v177, 0.0
    %v195 = vpack.c.bf16 %v181, %v179
    %v196 = vpack.c.bf16 %v182, %v180
    %v197 = vpack.c.bf16 %v185, %v183
    %v198 = vpack.c.bf16 %v186, %v184
    %v199 = vpack.c.bf16 %v189, %v187
    %v200 = vpack.c.bf16 %v190, %v188
    %v201 = vpack.c.bf16 %v193, %v191
    %v202 = vpack.c.bf16 %v194, %v192
    %v203 = vld [vmem:[#allocation2] sm:$0xff]
    %v204 = vld [vmem:[#allocation2 + $0x8] sm:$0xff]
    %v205 = vld [vmem:[#allocation2 + $0x10] sm:$0xff]
    %v206 = vld [vmem:[#allocation2 + $0x18] sm:$0xff]
    %v207 = vld [vmem:[#allocation2 + $0x20] sm:$0xff]
    %v208 = vld [vmem:[#allocation2 + $0x28] sm:$0xff]
    %v209 = vld [vmem:[#allocation2 + $0x30] sm:$0xff]
    %v210 = vld [vmem:[#allocation2 + $0x38] sm:$0xff]
    %v211 = vld [vmem:[#allocation2 + $0x40] sm:$0xff]
    %v212 = vld [vmem:[#allocation2 + $0x48] sm:$0xff]
    %v213 = vld [vmem:[#allocation2 + $0x50] sm:$0xff]
    %v214 = vld [vmem:[#allocation2 + $0x58] sm:$0xff]
    %v215 = vld [vmem:[#allocation2 + $0x60] sm:$0xff]
    %v216 = vld [vmem:[#allocation2 + $0x68] sm:$0xff]
    %v217 = vld [vmem:[#allocation2 + $0x70] sm:$0xff]
    %v218 = vld [vmem:[#allocation2 + $0x78] sm:$0xff]
    %v219 = vld [vmem:[#allocation2 + $0x80] sm:$0xff]
    %v220 = vld [vmem:[#allocation2 + $0x88] sm:$0xff]
    %v221 = vld [vmem:[#allocation2 + $0x90] sm:$0xff]
    %v222 = vld [vmem:[#allocation2 + $0x98] sm:$0xff]
    %v223 = vld [vmem:[#allocation2 + $0xa0] sm:$0xff]
    %v224 = vld [vmem:[#allocation2 + $0xa8] sm:$0xff]
    %v225 = vld [vmem:[#allocation2 + $0xb0] sm:$0xff]
    %v226 = vld [vmem:[#allocation2 + $0xb8] sm:$0xff]
    %v227 = vld [vmem:[#allocation2 + $0xc0] sm:$0xff]
    %v228 = vld [vmem:[#allocation2 + $0xc8] sm:$0xff]
    %v229 = vld [vmem:[#allocation2 + $0xd0] sm:$0xff]
    %v230 = vld [vmem:[#allocation2 + $0xd8] sm:$0xff]
    %v231 = vld [vmem:[#allocation2 + $0xe0] sm:$0xff]
    %v232 = vld [vmem:[#allocation2 + $0xe8] sm:$0xff]
    %v233 = vld [vmem:[#allocation2 + $0xf0] sm:$0xff]
    %v234 = vld [vmem:[#allocation2 + $0xf8] sm:$0xff]
    %v235 = vld [vmem:[%s5] sm:$0x3]
    %v237 = vlaneseq
    %v238 = vshrl.u32 %v237, 7
    %v239 = vsub.s32 0, %v238
    %v240 = vrot.slane %v235, %v239
    %v241 = vlaneseq
    %v242 = vshrl.u32 %v241, 7
    %v243 = vsub.s32 1, %v242
    %v244 = vrot.slane %v235, %v243
    %v279 = vunpack.c.l.b16 %v203
    %v280 = vunpack.c.h.b16 %v203
    %v281 = vunpack.c.l.b16 %v204
    %v282 = vunpack.c.h.b16 %v204
    %v283 = vunpack.c.l.b16 %v205
    %v284 = vunpack.c.h.b16 %v205
    %v285 = vunpack.c.l.b16 %v206
    %v286 = vunpack.c.h.b16 %v206
    %v287 = vunpack.c.l.b16 %v207
    %v288 = vunpack.c.h.b16 %v207
    %v289 = vunpack.c.l.b16 %v208
    %v290 = vunpack.c.h.b16 %v208
    %v291 = vunpack.c.l.b16 %v209
    %v292 = vunpack.c.h.b16 %v209
    %v293 = vunpack.c.l.b16 %v210
    %v294 = vunpack.c.h.b16 %v210
    %v295 = vunpack.c.l.b16 %v211
    %v296 = vunpack.c.h.b16 %v211
    %v297 = vunpack.c.l.b16 %v212
    %v298 = vunpack.c.h.b16 %v212
    %v299 = vunpack.c.l.b16 %v213
    %v300 = vunpack.c.h.b16 %v213
    %v301 = vunpack.c.l.b16 %v214
    %v302 = vunpack.c.h.b16 %v214
    %v303 = vunpack.c.l.b16 %v215
    %v304 = vunpack.c.h.b16 %v215
    %v305 = vunpack.c.l.b16 %v216
    %v306 = vunpack.c.h.b16 %v216
    %v307 = vunpack.c.l.b16 %v217
    %v308 = vunpack.c.h.b16 %v217
    %v309 = vunpack.c.l.b16 %v218
    %v310 = vunpack.c.h.b16 %v218
    %v311 = vunpack.c.l.b16 %v219
    %v312 = vunpack.c.h.b16 %v219
    %v313 = vunpack.c.l.b16 %v220
    %v314 = vunpack.c.h.b16 %v220
    %v315 = vunpack.c.l.b16 %v221
    %v316 = vunpack.c.h.b16 %v221
    %v317 = vunpack.c.l.b16 %v222
    %v318 = vunpack.c.h.b16 %v222
    %v319 = vunpack.c.l.b16 %v223
    %v320 = vunpack.c.h.b16 %v223
    %v321 = vunpack.c.l.b16 %v224
    %v322 = vunpack.c.h.b16 %v224
    %v323 = vunpack.c.l.b16 %v225
    %v324 = vunpack.c.h.b16 %v225
    %v325 = vunpack.c.l.b16 %v226
    %v326 = vunpack.c.h.b16 %v226
    %v327 = vunpack.c.l.b16 %v227
    %v328 = vunpack.c.h.b16 %v227
    %v329 = vunpack.c.l.b16 %v228
    %v330 = vunpack.c.h.b16 %v228
    %v331 = vunpack.c.l.b16 %v229
    %v332 = vunpack.c.h.b16 %v229
    %v333 = vunpack.c.l.b16 %v230
    %v334 = vunpack.c.h.b16 %v230
    %v335 = vunpack.c.l.b16 %v231
    %v336 = vunpack.c.h.b16 %v231
    %v337 = vunpack.c.l.b16 %v232
    %v338 = vunpack.c.h.b16 %v232
    %v339 = vunpack.c.l.b16 %v233
    %v340 = vunpack.c.h.b16 %v233
    %v341 = vunpack.c.l.b16 %v234
    %v342 = vunpack.c.h.b16 %v234
    %v343 = vpack.c.b16 %v281, %v279
    %v344 = vpack.c.b16 %v282, %v280
    %v345 = vpack.c.b16 %v285, %v283
    %v346 = vpack.c.b16 %v286, %v284
    %v347 = vpack.c.b16 %v289, %v287
    %v348 = vpack.c.b16 %v290, %v288
    %v349 = vpack.c.b16 %v293, %v291
    %v350 = vpack.c.b16 %v294, %v292
    %v351 = vpack.c.b16 %v297, %v295
    %v352 = vpack.c.b16 %v298, %v296
    %v353 = vpack.c.b16 %v301, %v299
    %v354 = vpack.c.b16 %v302, %v300
    %v355 = vpack.c.b16 %v305, %v303
    %v356 = vpack.c.b16 %v306, %v304
    %v357 = vpack.c.b16 %v309, %v307
    %v358 = vpack.c.b16 %v310, %v308
    %v359 = vpack.c.b16 %v313, %v311
    %v360 = vpack.c.b16 %v314, %v312
    %v361 = vpack.c.b16 %v317, %v315
    %v362 = vpack.c.b16 %v318, %v316
    %v363 = vpack.c.b16 %v321, %v319
    %v364 = vpack.c.b16 %v322, %v320
    %v365 = vpack.c.b16 %v325, %v323
    %v366 = vpack.c.b16 %v326, %v324
    %v367 = vpack.c.b16 %v329, %v327
    %v368 = vpack.c.b16 %v330, %v328
    %v369 = vpack.c.b16 %v333, %v331
    %v370 = vpack.c.b16 %v334, %v332
    %v371 = vpack.c.b16 %v337, %v335
    %v372 = vpack.c.b16 %v338, %v336
    %v373 = vpack.c.b16 %v341, %v339
    %v374 = vpack.c.b16 %v342, %v340
    %407 = vmatprep.subr.bf16.mxu0 %v344
    %408 = vmatpush1.bf16.msra.mxu0 %v343
    %409 = vmatprep.subr.bf16.mxu0 %v346
    %410 = vmatpush1.bf16.msra.mxu0 %v345
    %411 = vmatprep.subr.bf16.mxu0 %v348
    %412 = vmatpush1.bf16.msra.mxu0 %v347
    %413 = vmatprep.subr.bf16.mxu0 %v350
    %414 = vmatpush1.bf16.msra.mxu0 %v349
    %415 = vmatprep.subr.bf16.mxu0 %v352
    %416 = vmatpush1.bf16.msra.mxu0 %v351
    %417 = vmatprep.subr.bf16.mxu0 %v354
    %418 = vmatpush1.bf16.msra.mxu0 %v353
    %419 = vmatprep.subr.bf16.mxu0 %v356
    %420 = vmatpush1.bf16.msra.mxu0 %v355
    %421 = vmatprep.subr.bf16.mxu0 %v358
    %422 = vmatpush1.bf16.msra.mxu0 %v357
    %423 = vmatprep.subr.bf16.mxu0 %v360
    %424 = vmatpush1.bf16.msra.mxu0 %v359
    %425 = vmatprep.subr.bf16.mxu0 %v362
    %426 = vmatpush1.bf16.msra.mxu0 %v361
    %427 = vmatprep.subr.bf16.mxu0 %v364
    %428 = vmatpush1.bf16.msra.mxu0 %v363
    %429 = vmatprep.subr.bf16.mxu0 %v366
    %430 = vmatpush1.bf16.msra.mxu0 %v365
    %431 = vmatprep.subr.bf16.mxu0 %v368
    %432 = vmatpush1.bf16.msra.mxu0 %v367
    %433 = vmatprep.subr.bf16.mxu0 %v370
    %434 = vmatpush1.bf16.msra.mxu0 %v369
    %435 = vmatprep.subr.bf16.mxu0 %v372
    %436 = vmatpush1.bf16.msra.mxu0 %v371
    %437 = vmatprep.subr.bf16.mxu0 %v374
    %438 = vmatpush1.bf16.msra.mxu0 %v373
    %439 = vmatprep.mubr.bf16.mxu0 %v196
    %440 = vmatmul.mubr.bf16.gmra.mrb[0].mxu0 %v195
    %v441 = vpop.f32.mrb[0].mxu0
    %v442 = vadd.f32 %v240, %v441
    %v443 = vpop.f32.mrb[0].mxu0
    %v444 = vadd.f32 %v244, %v443
    %v445 = vpop.f32.mrb[0].mxu0
    %v446 = vadd.f32 %v240, %v445
    %v447 = vpop.f32.mrb[0].mxu0
    %v448 = vadd.f32 %v244, %v447
    %449 = vmatprep.mubr.bf16.mxu0 %v198
    %450 = vmatmul.mubr.bf16.gmra.mrb[0].mxu0 %v197
    %v451 = vpop.f32.mrb[0].mxu0
    %v452 = vadd.f32 %v240, %v451
    %v453 = vpop.f32.mrb[0].mxu0
    %v454 = vadd.f32 %v244, %v453
    %v455 = vpop.f32.mrb[0].mxu0
    %v456 = vadd.f32 %v240, %v455
    %v457 = vpop.f32.mrb[0].mxu0
    %v458 = vadd.f32 %v244, %v457
    %459 = vmatprep.mubr.bf16.mxu0 %v200
    %460 = vmatmul.mubr.bf16.gmra.mrb[0].mxu0 %v199
    %v461 = vpop.f32.mrb[0].mxu0
    %v462 = vadd.f32 %v240, %v461
    %v463 = vpop.f32.mrb[0].mxu0
    %v464 = vadd.f32 %v244, %v463
    %v465 = vpop.f32.mrb[0].mxu0
    %v466 = vadd.f32 %v240, %v465
    %v467 = vpop.f32.mrb[0].mxu0
    %v468 = vadd.f32 %v244, %v467
    %469 = vmatprep.mubr.bf16.mxu0 %v202
    %470 = vmatmul.mubr.bf16.gmra.mrb[0].mxu0 %v201
    %v471 = vpop.f32.mrb[0].mxu0
    %v472 = vadd.f32 %v240, %v471
    %v473 = vpop.f32.mrb[0].mxu0
    %v474 = vadd.f32 %v244, %v473
    %v475 = vpop.f32.mrb[0].mxu0
    %v476 = vadd.f32 %v240, %v475
    %v477 = vpop.f32.mrb[0].mxu0
    %v478 = vadd.f32 %v244, %v477
    %479 = vdwg.mxu0
    %v480 = vmax.f32 %v442, 0.0
    %v481 = vmax.f32 %v444, 0.0
    %v482 = vmax.f32 %v446, 0.0
    %v483 = vmax.f32 %v448, 0.0
    %v484 = vmax.f32 %v452, 0.0
    %v485 = vmax.f32 %v454, 0.0
    %v486 = vmax.f32 %v456, 0.0
    %v487 = vmax.f32 %v458, 0.0
    %v488 = vmax.f32 %v462, 0.0
    %v489 = vmax.f32 %v464, 0.0
    %v490 = vmax.f32 %v466, 0.0
    %v491 = vmax.f32 %v468, 0.0
    %v492 = vmax.f32 %v472, 0.0
    %v493 = vmax.f32 %v474, 0.0
    %v494 = vmax.f32 %v476, 0.0
    %v495 = vmax.f32 %v478, 0.0
    %v496 = vpack.c.bf16 %v482, %v480
    %v497 = vpack.c.bf16 %v483, %v481
    %v498 = vpack.c.bf16 %v486, %v484
    %v499 = vpack.c.bf16 %v487, %v485
    %v500 = vpack.c.bf16 %v490, %v488
    %v501 = vpack.c.bf16 %v491, %v489
    %v502 = vpack.c.bf16 %v494, %v492
    %v503 = vpack.c.bf16 %v495, %v493
    %v504 = vld [vmem:[%s6] sm:$0xf]
    %v505 = vld [vmem:[%s6 + $0x4] sm:$0xf]
    %v506 = vld [vmem:[%s6 + $0x8] sm:$0xf]
    %v507 = vld [vmem:[%s6 + $0xc] sm:$0xf]
    %v508 = vld [vmem:[%s6 + $0x10] sm:$0xf]
    %v509 = vld [vmem:[%s6 + $0x14] sm:$0xf]
    %v510 = vld [vmem:[%s6 + $0x18] sm:$0xf]
    %v511 = vld [vmem:[%s6 + $0x1c] sm:$0xf]
    %v512 = vld [vmem:[%s6 + $0x20] sm:$0xf]
    %v513 = vld [vmem:[%s6 + $0x24] sm:$0xf]
    %v514 = vld [vmem:[%s6 + $0x28] sm:$0xf]
    %v515 = vld [vmem:[%s6 + $0x2c] sm:$0xf]
    %v516 = vld [vmem:[%s6 + $0x30] sm:$0xf]
    %v517 = vld [vmem:[%s6 + $0x34] sm:$0xf]
    %v518 = vld [vmem:[%s6 + $0x38] sm:$0xf]
    %v519 = vld [vmem:[%s6 + $0x3c] sm:$0xf]
    %v520 = vld [vmem:[%s6 + $0x40] sm:$0xf]
    %v521 = vld [vmem:[%s6 + $0x44] sm:$0xf]
    %v522 = vld [vmem:[%s6 + $0x48] sm:$0xf]
    %v523 = vld [vmem:[%s6 + $0x4c] sm:$0xf]
    %v524 = vld [vmem:[%s6 + $0x50] sm:$0xf]
    %v525 = vld [vmem:[%s6 + $0x54] sm:$0xf]
    %v526 = vld [vmem:[%s6 + $0x58] sm:$0xf]
    %v527 = vld [vmem:[%s6 + $0x5c] sm:$0xf]
    %v528 = vld [vmem:[%s6 + $0x60] sm:$0xf]
    %v529 = vld [vmem:[%s6 + $0x64] sm:$0xf]
    %v530 = vld [vmem:[%s6 + $0x68] sm:$0xf]
    %v531 = vld [vmem:[%s6 + $0x6c] sm:$0xf]
    %v532 = vld [vmem:[%s6 + $0x70] sm:$0xf]
    %v533 = vld [vmem:[%s6 + $0x74] sm:$0xf]
    %v534 = vld [vmem:[%s6 + $0x78] sm:$0xf]
    %v535 = vld [vmem:[%s6 + $0x7c] sm:$0xf]
    %v536 = vld [vmem:[%s7] sm:$0x1]
    %v538 = vlaneseq
    %v539 = vshrl.u32 %v538, 7
    %v540 = vsub.s32 0, %v539
    %v541 = vrot.slane %v536, %v540
    %v575 = vunpack.c.l.b16 %v504
    %v576 = vunpack.c.l.b16 %v505
    %v577 = vunpack.c.l.b16 %v506
    %v578 = vunpack.c.l.b16 %v507
    %v579 = vunpack.c.l.b16 %v508
    %v580 = vunpack.c.l.b16 %v509
    %v581 = vunpack.c.l.b16 %v510
    %v582 = vunpack.c.l.b16 %v511
    %v583 = vunpack.c.l.b16 %v512
    %v584 = vunpack.c.l.b16 %v513
    %v585 = vunpack.c.l.b16 %v514
    %v586 = vunpack.c.l.b16 %v515
    %v587 = vunpack.c.l.b16 %v516
    %v588 = vunpack.c.l.b16 %v517
    %v589 = vunpack.c.l.b16 %v518
    %v590 = vunpack.c.l.b16 %v519
    %v591 = vunpack.c.l.b16 %v520
    %v592 = vunpack.c.l.b16 %v521
    %v593 = vunpack.c.l.b16 %v522
    %v594 = vunpack.c.l.b16 %v523
    %v595 = vunpack.c.l.b16 %v524
    %v596 = vunpack.c.l.b16 %v525
    %v597 = vunpack.c.l.b16 %v526
    %v598 = vunpack.c.l.b16 %v527
    %v599 = vunpack.c.l.b16 %v528
    %v600 = vunpack.c.l.b16 %v529
    %v601 = vunpack.c.l.b16 %v530
    %v602 = vunpack.c.l.b16 %v531
    %v603 = vunpack.c.l.b16 %v532
    %v604 = vunpack.c.l.b16 %v533
    %v605 = vunpack.c.l.b16 %v534
    %v606 = vunpack.c.l.b16 %v535
    %v607 = vpack.c.b16 %v576, %v575
    %v608 = vpack.c.b16 %v578, %v577
    %v609 = vpack.c.b16 %v580, %v579
    %v610 = vpack.c.b16 %v582, %v581
    %v611 = vpack.c.b16 %v584, %v583
    %v612 = vpack.c.b16 %v586, %v585
    %v613 = vpack.c.b16 %v588, %v587
    %v614 = vpack.c.b16 %v590, %v589
    %v615 = vpack.c.b16 %v592, %v591
    %v616 = vpack.c.b16 %v594, %v593
    %v617 = vpack.c.b16 %v596, %v595
    %v618 = vpack.c.b16 %v598, %v597
    %v619 = vpack.c.b16 %v600, %v599
    %v620 = vpack.c.b16 %v602, %v601
    %v621 = vpack.c.b16 %v604, %v603
    %v622 = vpack.c.b16 %v606, %v605
    %639 = vmatprep.subr.bf16.mxu0 0
    %640 = vmatpush1.bf16.msra.mxu0 %v607
    %641 = vmatprep.subr.bf16.mxu0 0
    %642 = vmatpush1.bf16.msra.mxu0 %v608
    %643 = vmatprep.subr.bf16.mxu0 0
    %644 = vmatpush1.bf16.msra.mxu0 %v609
    %645 = vmatprep.subr.bf16.mxu0 0
    %646 = vmatpush1.bf16.msra.mxu0 %v610
    %647 = vmatprep.subr.bf16.mxu0 0
    %648 = vmatpush1.bf16.msra.mxu0 %v611
    %649 = vmatprep.subr.bf16.mxu0 0
    %650 = vmatpush1.bf16.msra.mxu0 %v612
    %651 = vmatprep.subr.bf16.mxu0 0
    %652 = vmatpush1.bf16.msra.mxu0 %v613
    %653 = vmatprep.subr.bf16.mxu0 0
    %654 = vmatpush1.bf16.msra.mxu0 %v614
    %655 = vmatprep.subr.bf16.mxu0 0
    %656 = vmatpush1.bf16.msra.mxu0 %v615
    %657 = vmatprep.subr.bf16.mxu0 0
    %658 = vmatpush1.bf16.msra.mxu0 %v616
    %659 = vmatprep.subr.bf16.mxu0 0
    %660 = vmatpush1.bf16.msra.mxu0 %v617
    %661 = vmatprep.subr.bf16.mxu0 0
    %662 = vmatpush1.bf16.msra.mxu0 %v618
    %663 = vmatprep.subr.bf16.mxu0 0
    %664 = vmatpush1.bf16.msra.mxu0 %v619
    %665 = vmatprep.subr.bf16.mxu0 0
    %666 = vmatpush1.bf16.msra.mxu0 %v620
    %667 = vmatprep.subr.bf16.mxu0 0
    %668 = vmatpush1.bf16.msra.mxu0 %v621
    %669 = vmatprep.subr.bf16.mxu0 0
    %670 = vmatpush1.bf16.msra.mxu0 %v622
    %671 = vmatprep.mubr.bf16.mxu0 %v497
    %672 = vmatmul.mubr.bf16.gmra.mrb[0].mxu0 %v496
    %v673 = vpop.f32.mrb[0].mxu0
    %v674 = vadd.f32 %v541, %v673
    %v675 = vpop.f32.mrb[0].mxu0
    %v676 = vpop.f32.mrb[0].mxu0
    %v677 = vadd.f32 %v541, %v676
    %v678 = vpop.f32.mrb[0].mxu0
    %679 = vmatprep.mubr.bf16.mxu0 %v499
    %680 = vmatmul.mubr.bf16.gmra.mrb[0].mxu0 %v498
    %v681 = vpop.f32.mrb[0].mxu0
    %v682 = vadd.f32 %v541, %v681
    %v683 = vpop.f32.mrb[0].mxu0
    %v684 = vpop.f32.mrb[0].mxu0
    %v685 = vadd.f32 %v541, %v684
    %v686 = vpop.f32.mrb[0].mxu0
    %687 = vmatprep.mubr.bf16.mxu0 %v501
    %688 = vmatmul.mubr.bf16.gmra.mrb[0].mxu0 %v500
    %v689 = vpop.f32.mrb[0].mxu0
    %v690 = vadd.f32 %v541, %v689
    %v691 = vpop.f32.mrb[0].mxu0
    %v692 = vpop.f32.mrb[0].mxu0
    %v693 = vadd.f32 %v541, %v692
    %v694 = vpop.f32.mrb[0].mxu0
    %695 = vmatprep.mubr.bf16.mxu0 %v503
    %696 = vmatmul.mubr.bf16.gmra.mrb[0].mxu0 %v502
    %v697 = vpop.f32.mrb[0].mxu0
    %v698 = vadd.f32 %v541, %v697
    %v699 = vpop.f32.mrb[0].mxu0
    %v700 = vpop.f32.mrb[0].mxu0
    %v701 = vadd.f32 %v541, %v700
    %v702 = vpop.f32.mrb[0].mxu0
    %703 = vdwg.mxu0
    %704 = vxpose.xlu0.b32.start [1/16] %v674, 128
    %705 = vxpose.xlu0.b32.cont [2/16] %v677, 128
    %706 = vxpose.xlu0.b32.cont [3/16] %v682, 128
    %707 = vxpose.xlu0.b32.cont [4/16] %v685, 128
    %708 = vxpose.xlu0.b32.cont [5/16] %v690, 128
    %709 = vxpose.xlu0.b32.cont [6/16] %v693, 128
    %710 = vxpose.xlu0.b32.cont [7/16] %v698, 128
    %711 = vxpose.xlu0.b32.cont [8/16] %v701, 128
    %712 = vxpose.xlu0.b32.cont [9/16] 0.0, 128
    %713 = vxpose.xlu0.b32.cont [10/16] 0.0, 128
    %714 = vxpose.xlu0.b32.cont [11/16] 0.0, 128
    %715 = vxpose.xlu0.b32.cont [12/16] 0.0, 128
    %716 = vxpose.xlu0.b32.cont [13/16] 0.0, 128
    %717 = vxpose.xlu0.b32.cont [14/16] 0.0, 128
    %718 = vxpose.xlu0.b32.cont [15/16] 0.0, 128
    %719 = vxpose.xlu0.b32.end [16/16] 0.0, 128
    %v720 = vpop.trf.xlu0
    %v721 = vpop.trf.xlu0
    %v722 = vpop.trf.xlu0
    %v723 = vpop.trf.xlu0
    %v724 = vpop.trf.xlu0
    %v725 = vpop.trf.xlu0
    %v726 = vpop.trf.xlu0
    %v727 = vpop.trf.xlu0
    %v728 = vpop.trf.xlu0
    %v729 = vpop.trf.xlu0
    %v730 = vpop.trf.xlu0
    %v731 = vpop.trf.xlu0
    %v732 = vpop.trf.xlu0
    %v733 = vpop.trf.xlu0
    %v734 = vpop.trf.xlu0
    %v735 = vpop.trf.xlu0
    %v736 = vmax.f32 %v721, -20.0
    %v737 = vmin.f32 %v736, 2.0
    %v738 = vmul.f32 %v737, 1.442695
    %v739 = vpow.pop %v738
    %v740 = vld [vmem:[%s1] sm:$0xff]
    %v741 = vmul.f32 %v739, %v740
    %v742 = vadd.f32 %v720, %v741
    %v743 = vtanh.pop %v742
    %v744 = vmul.f32 %v740, -0.5
    %v745 = vmul.f32 %v744, %v740
    %v746 = vsub.f32 %v745, %v737
    %v747 = vsub.f32 %v746, 0.9189385
    %v748 = vmul.f32 %v743, %v743
    %v749 = vsub.f32 1.0, %v748
    %v750 = vadd.f32 %v749, 1e-06
    %v751 = vlog2.pop %v750
    %v752 = vmul.f32 %v751, 0.6931472
    %v753 = vsub.f32 %v747, %v752
    %vm754 = vcmask 523264
    %v755 = vsel %vm754, %v753, 0.0
    %v756 = vrot.slane %v755, 4
    %v757 = vadd.f32 %v755, %v756
    %v758 = vrot.slane %v757, 2
    %v759 = vadd.f32 %v757, %v758
    %v760 = vrot.slane %v759, 1
    %v761 = vadd.f32 %v759, %v760
    %v762 = vsub.f32 0.0, %v761
    %v763 = vtanh.pop %v720
    %764 = vst.msk [vmem:[#allocation5] sm:$0xff] %vm754, %v743
    %765 = vst.msk [vmem:[#allocation5 + $0x8] sm:$0xff] %vm754, %v763
    %vm766 = vcmask 516096
    %767 = vst.msk [vmem:[#allocation5 + $0x10] sm:$0x1] %vm766, %v762
    // Predicated region
    $region38: #{tpu_custom_call.1} parent=1 // pred_check
      _
    $region39: #{tpu_custom_call.1} parent=1 // pred_check_branch
      %769 = sbr.rel (0) target = $region41
    $region40: #{tpu_custom_call.1} parent=1 // pred_region
      %s771 = ssub.s32 384, 384
      %772 = vsyncadd [#allocation4], %s771
      %s773 = sshll.u32 [#allocation5], 4
      %s774 = int_to_ptr.vmem [resolvable:$true] %s773
      %779 = dma.vmem_to_hbm [thread:$0]  %s774, 384, %s8, [#allocation4], 128, 128, 8
    $region41: #{tpu_custom_call.1} parent=1 // pred_fallthru
      _
    // Predicated region
    $region42: #{tpu_custom_call.1} parent=1 // pred_check
      _
    $region43: #{tpu_custom_call.1} parent=1 // pred_check_branch
      %781 = sbr.rel (0) target = $region45
    $region44: #{tpu_custom_call.1} parent=1 // pred_region
      %782 = dma.done [#allocation4], 384
    $region45: #{tpu_custom_call.1} parent=1 // pred_fallthru
      _
    %783 = vsyncpa [#allocation3], 1
    %784 = vsyncpa [#allocation4], 1

</llo_original>
